<compile_context>
chip_gen: v5e
topology: v5e:2x2
jax: 0.10.0
libtpu: 0.0.40
codegen_flags: <defaults>
</compile_context>

<pallas_src>
import functools

import jax
import jax.numpy as jnp
from jax.experimental import pallas as pl
from jax.experimental.pallas import tpu as pltpu


def _round_up(x, m):
    return (x + m - 1) // m * m


def _cdiv(a, b):
    return (a + b - 1) // b


def _log_softmax_masked(y, out_valid):
    """log_softmax over the first `out_valid` lanes; padded lanes excluded."""
    neg = jnp.float32(jnp.finfo(jnp.float32).min)
    lane = jax.lax.broadcasted_iota(jnp.int32, y.shape, dimension=1)
    y = jnp.where(lane < out_valid, y, neg)
    m = jnp.max(y, axis=-1, keepdims=True)
    s = jnp.sum(jnp.exp(y - m), axis=-1, keepdims=True)
    return y - m - jnp.log(s)


def _mlp_kernel_single_k(x_ref, w1_ref, b1_ref, w2_ref, b2_ref, o_ref, *,
                         out_valid, apply_log_softmax, matmul_dtype):
    """Fast path (whole K in one tile): log_softmax(relu(xW1+b1)W2+b2)."""
    x = x_ref[...].astype(matmul_dtype)            # f32 -> bf16 on the tile
    w1 = w1_ref[...].astype(matmul_dtype)
    h = jnp.dot(x, w1, preferred_element_type=jnp.float32)
    h = jnp.maximum(h + b1_ref[...], 0.0)
    w2 = w2_ref[...].astype(matmul_dtype)
    y = jnp.dot(h.astype(matmul_dtype), w2, preferred_element_type=jnp.float32)
    y = y + b2_ref[...]
    if apply_log_softmax:
        y = _log_softmax_masked(y, out_valid)
    o_ref[...] = y.astype(o_ref.dtype)


def _mlp_kernel_multi_k(x_ref, w1_ref, b1_ref, w2_ref, b2_ref, o_ref, h_acc, *,
                        out_valid, apply_log_softmax, matmul_dtype):
    """K-tiled path: accumulate x@W1 over the k grid axis, epilogue at k==last."""
    k = pl.program_id(1)
    x = x_ref[...].astype(matmul_dtype)
    w1 = w1_ref[...].astype(matmul_dtype)
    part = jnp.dot(x, w1, preferred_element_type=jnp.float32)

    @pl.when(k == 0)
    def _():
        h_acc[...] = part                          # overwrite: no zero-init

    @pl.when(k != 0)
    def _():
        h_acc[...] += part

    @pl.when(k == pl.num_programs(1) - 1)
    def _():
        h = jnp.maximum(h_acc[...] + b1_ref[...], 0.0)
        w2 = w2_ref[...].astype(matmul_dtype)
        y = jnp.dot(h.astype(matmul_dtype), w2,
                    preferred_element_type=jnp.float32)
        y = y + b2_ref[...]
        if apply_log_softmax:
            y = _log_softmax_masked(y, out_valid)
        o_ref[...] = y.astype(o_ref.dtype)


def linear_classifier_forward(x, w1, b1, w2, b2, *, apply_log_softmax=True,
                              tb=1024, tk=1024, matmul_dtype=jnp.bfloat16):
    """x: (B, in_feature) or any (B, ...) which is flattened (reshape(B, -1))."""
    B = x.shape[0]
    x2d = x.reshape(B, -1)
    in_f = x2d.shape[1]
    hid = w1.shape[1]
    out = w2.shape[1]
    out_dtype = x2d.dtype

    H = _round_up(hid, 128)                 # hidden width (=128 in get_model)
    N_pad = _round_up(out, 128)             # lane-dense output width

    # --- reduction (K) dim: no copy of x in the common 128-aligned case ------
    if in_f % 128 == 0:
        K = in_f
        x_in = x2d                          # streamed as-is; cast in-kernel
        w1_k = w1
    else:
        K = _round_up(in_f, 128)
        x_in = jnp.zeros((B, K), x2d.dtype).at[:, :in_f].set(x2d)
        w1_k = jnp.zeros((K, hid), w1.dtype).at[:in_f, :].set(w1)

    # --- (tiny) weight / bias padding to lane-dense shapes -------------------
    if hid == H:
        w1_p = w1_k
        b1_p = b1.astype(jnp.float32).reshape(1, H)
    else:
        w1_p = jnp.zeros((K, H), w1.dtype).at[:, :hid].set(w1_k)
        b1_p = jnp.zeros((1, H), jnp.float32).at[0, :hid].set(
            b1.astype(jnp.float32))
    if hid == H and out == N_pad:
        w2_p = w2
        b2_p = b2.astype(jnp.float32).reshape(1, N_pad)
    else:
        w2_p = jnp.zeros((H, N_pad), w2.dtype).at[:hid, :out].set(w2)
        b2_p = jnp.zeros((1, N_pad), jnp.float32).at[0, :out].set(
            b2.astype(jnp.float32))

    # --- batch tile: near-equal tiles (mult. of 8); >=2 tiles for v7x --------
    tb = max(8, _round_up(tb, 8))
    n_bt = max(1, _cdiv(B, tb))
    if n_bt == 1 and B >= 16:
        n_bt = 2                            # give both v7x TensorCores work
    TB = max(8, _round_up(_cdiv(B, n_bt), 8))
    grid_b = _cdiv(B, TB)                   # ragged B -> partial edge block
    B_pad = grid_b * TB                     # only the *output* buffer is padded

    # --- K tile: largest multiple of 128 <= tk that divides K ----------------
    tk = max(128, _round_up(tk, 128))
    TK = min(tk, K)
    while K % TK != 0:
        TK -= 128
    grid_k = K // TK

    # --- VMEM budget: ~2x the double-buffered working set --------------------
    x_bytes = jnp.dtype(x_in.dtype).itemsize
    w_bytes = jnp.dtype(w1_p.dtype).itemsize
    o_bytes = jnp.dtype(out_dtype).itemsize
    vmem_est = (2 * TB * TK * x_bytes       # x tiles (double-buffered)
                + 2 * TK * H * w_bytes      # w1 tiles
                + 2 * H * N_pad * w_bytes   # w2 (resident)
                + 2 * (H + N_pad) * 4       # biases
                + 2 * TB * N_pad * o_bytes  # output tiles
                + TB * H * 4)               # f32 hidden accumulator
    vmem_limit = int(min(max(2 * vmem_est + (1 << 20), 4 * 1024 * 1024),
                         48 * 1024 * 1024))

    out_shape = jax.ShapeDtypeStruct((B_pad, N_pad), out_dtype)

    if grid_k == 1:
        kernel = functools.partial(_mlp_kernel_single_k, out_valid=out,
                                   apply_log_softmax=apply_log_softmax,
                                   matmul_dtype=matmul_dtype)
        y_pad = pl.pallas_call(
            kernel,
            out_shape=out_shape,
            grid_spec=pltpu.PrefetchScalarGridSpec(
                num_scalar_prefetch=0,
                grid=(grid_b,),
                in_specs=[
                    pl.BlockSpec((TB, K), lambda i: (i, 0)),       # x
                    pl.BlockSpec((K, H), lambda i: (0, 0)),        # W1
                    pl.BlockSpec((1, H), lambda i: (0, 0)),        # b1
                    pl.BlockSpec((H, N_pad), lambda i: (0, 0)),    # W2
                    pl.BlockSpec((1, N_pad), lambda i: (0, 0)),    # b2
                ],
                out_specs=pl.BlockSpec((TB, N_pad), lambda i: (i, 0)),
            ),
            compiler_params=pltpu.CompilerParams(
                dimension_semantics=("parallel",),
                vmem_limit_bytes=vmem_limit,
            ),
        )(x_in, w1_p, b1_p, w2_p, b2_p)
    else:
        kernel = functools.partial(_mlp_kernel_multi_k, out_valid=out,
                                   apply_log_softmax=apply_log_softmax,
                                   matmul_dtype=matmul_dtype)
        y_pad = pl.pallas_call(
            kernel,
            out_shape=out_shape,
            grid_spec=pltpu.PrefetchScalarGridSpec(
                num_scalar_prefetch=0,
                grid=(grid_b, grid_k),
                in_specs=[
                    pl.BlockSpec((TB, TK), lambda i, k: (i, k)),    # x
                    pl.BlockSpec((TK, H), lambda i, k: (k, 0)),     # W1
                    pl.BlockSpec((1, H), lambda i, k: (0, 0)),      # b1
                    pl.BlockSpec((H, N_pad), lambda i, k: (0, 0)),  # W2
                    pl.BlockSpec((1, N_pad), lambda i, k: (0, 0)),  # b2
                ],
                out_specs=pl.BlockSpec((TB, N_pad), lambda i, k: (i, 0)),
                scratch_shapes=[pltpu.VMEM((TB, H), jnp.float32)],
            ),
            compiler_params=pltpu.CompilerParams(
                dimension_semantics=("parallel", "arbitrary"),
                vmem_limit_bytes=vmem_limit,
            ),
        )(x_in, w1_p, b1_p, w2_p, b2_p)

    # Slice off batch / lane padding.
    return y_pad[:B, :out]


def init_params(key, in_feature, out_put, hidden=128, dtype=jnp.float32):
    """PyTorch-style uniform(-1/sqrt(fan_in), 1/sqrt(fan_in)) init."""
    k1, k2, k3, k4 = jax.random.split(key, 4)
    bound1 = 1.0 / jnp.sqrt(in_feature)
    bound2 = 1.0 / jnp.sqrt(hidden)
    # Stored already transposed: (fan_in, fan_out)
    w1 = jax.random.uniform(k1, (in_feature, hidden), dtype, -bound1, bound1)
    b1 = jax.random.uniform(k2, (hidden,), dtype, -bound1, bound1)
    w2 = jax.random.uniform(k3, (hidden, out_put), dtype, -bound2, bound2)
    b2 = jax.random.uniform(k4, (out_put,), dtype, -bound2, bound2)
    return w1, b1, w2, b2


def _reference(x, w1, b1, w2, b2, apply_log_softmax=True,
               matmul_dtype=jnp.bfloat16):
    """Pure-JAX reference matching kernel precision (bf16 matmul, f32 accum)."""
    x2d = x.reshape(x.shape[0], -1)
    h = jnp.dot(x2d.astype(matmul_dtype), w1.astype(matmul_dtype),
                preferred_element_type=jnp.float32) + b1.astype(jnp.float32)
    h = jnp.maximum(h, 0.0)
    y = jnp.dot(h.astype(matmul_dtype), w2.astype(matmul_dtype),
                preferred_element_type=jnp.float32) + b2.astype(jnp.float32)
    if apply_log_softmax:
        y = jax.nn.log_softmax(y, axis=-1)
    return y


if __name__ == "__main__":
    key = jax.random.PRNGKey(0)
    kx, kp, kx2, kp2, kx3, kp3 = jax.random.split(key, 6)

    # classifier_net in get_model is Linear_Classifier(256, out_size): the
    # LSTM's last hidden state (B, 256) -> logits (B, out_size) -> log_softmax.
    B, in_feature, out_put = 2, 256, 10
    x = jax.random.normal(kx, (B, in_feature), dtype=jnp.float32)
    w1, b1, w2, b2 = init_params(kp, in_feature, out_put)

    y = jax.block_until_ready(linear_classifier_forward(x, w1, b1, w2, b2))
    assert y.shape == (B, out_put)

    ref = _reference(x, w1, b1, w2, b2)
    assert jnp.allclose(y, ref, atol=2e-3, rtol=2e-3), "mismatch vs bf16 ref"

    # Loose sanity check against the pure-f32 reference (bf16 rounding slack).
    ref_f32 = jax.nn.log_softmax(
        jnp.maximum(x.reshape(B, -1) @ w1 + b1, 0.0) @ w2 + b2, -1)
    assert jnp.allclose(y, ref_f32, atol=5e-2, rtol=5e-2), "mismatch vs f32 ref"

    # Ragged batch + non-128-multiple in_feature/out (padded-K + 2 batch tiles).
    B2, in2, out2 = 20, 200, 7
    x2 = jax.random.normal(kx2, (B2, in2), dtype=jnp.float32)
    p2 = init_params(kp2, in2, out2)
    y2 = jax.block_until_ready(linear_classifier_forward(x2, *p2))
    assert y2.shape == (B2, out2)
    assert jnp.allclose(y2, _reference(x2, *p2), atol=2e-3, rtol=2e-3)

    # Large in_feature exercising the K-tiled accumulator kernel.
    B3, in3, out3 = 16, 2048, 10
    x3 = jax.random.normal(kx3, (B3, in3), dtype=jnp.float32)
    p3 = init_params(kp3, in3, out3)
    y3 = jax.block_until_ready(linear_classifier_forward(x3, *p3, tk=512))
    assert y3.shape == (B3, out3)
    assert jnp.allclose(y3, _reference(x3, *p3), atol=2e-3, rtol=2e-3)

    print("KERNEL_OK")
</pallas_src>

<mosaic_0001>
module attributes {stable_mosaic.version = 11 : i64} {
  func.func @_mlp_kernel_single_k(%arg0: i32, %arg1: memref<8x256xf32, #tpu.memory_space<vmem>>, %arg2: memref<256x128xf32, #tpu.memory_space<vmem>>, %arg3: memref<1x128xf32, #tpu.memory_space<vmem>>, %arg4: memref<128x128xf32, #tpu.memory_space<vmem>>, %arg5: memref<1x128xf32, #tpu.memory_space<vmem>>, %arg6: memref<8x128xf32, #tpu.memory_space<vmem>>) attributes {dimension_semantics = [#tpu.dimension_semantics<parallel>], iteration_bounds = array<i64: 1>, scalar_prefetch = 0 : i64, scratch_operands = 0 : i64, tpu.core_type = #tpu.core_type<tc>, window_params = [{transform_indices = @transform_0, window_bounds = array<i64: 8, 256>}, {pipeline_mode = #tpu.pipeline_mode<synchronous>, transform_indices = @transform_1, window_bounds = array<i64: 256, 128>}, {pipeline_mode = #tpu.pipeline_mode<synchronous>, transform_indices = @transform_2, window_bounds = array<i64: 1, 128>}, {pipeline_mode = #tpu.pipeline_mode<synchronous>, transform_indices = @transform_3, window_bounds = array<i64: 128, 128>}, {pipeline_mode = #tpu.pipeline_mode<synchronous>, transform_indices = @transform_4, window_bounds = array<i64: 1, 128>}, {transform_indices = @transform_5, window_bounds = array<i64: 8, 128>}]} {
    %c0 = arith.constant 0 : index
    %c0_0 = arith.constant 0 : index
    %0 = vector.load %arg1[%c0, %c0_0] : memref<8x256xf32, #tpu.memory_space<vmem>>, vector<8x256xf32>
    %1 = arith.truncf %0 : vector<8x256xf32> to vector<8x256xbf16>
    %c0_1 = arith.constant 0 : index
    %c0_2 = arith.constant 0 : index
    %2 = vector.load %arg2[%c0_1, %c0_2] : memref<256x128xf32, #tpu.memory_space<vmem>>, vector<256x128xf32>
    %3 = arith.truncf %2 : vector<256x128xf32> to vector<256x128xbf16>
    %cst = arith.constant dense<0.000000e+00> : vector<8x128xf32>
    %4 = tpu.matmul %1, %3, %cst {dimension_numbers = #tpu.dot_dimension_numbers<[1], [0], [0], [1], [0, 0, 1, 1], [], []>} : vector<8x256xbf16>, vector<256x128xbf16>, vector<8x128xf32> -> vector<8x128xf32>
    %c0_3 = arith.constant 0 : index
    %c0_4 = arith.constant 0 : index
    %5 = vector.load %arg3[%c0_3, %c0_4] : memref<1x128xf32, #tpu.memory_space<vmem>>, vector<1x128xf32>
    %6 = vector.broadcast %5 : vector<1x128xf32> to vector<8x128xf32>
    %7 = arith.addf %4, %6 : vector<8x128xf32>
    %cst_5 = arith.constant 0.000000e+00 : f32
    %8 = vector.broadcast %cst_5 : f32 to vector<8x128xf32>
    %9 = arith.maximumf %7, %8 : vector<8x128xf32>
    %c0_6 = arith.constant 0 : index
    %c0_7 = arith.constant 0 : index
    %10 = vector.load %arg4[%c0_6, %c0_7] : memref<128x128xf32, #tpu.memory_space<vmem>>, vector<128x128xf32>
    %11 = arith.truncf %10 : vector<128x128xf32> to vector<128x128xbf16>
    %12 = arith.truncf %9 : vector<8x128xf32> to vector<8x128xbf16>
    %cst_8 = arith.constant dense<0.000000e+00> : vector<8x128xf32>
    %13 = tpu.matmul %12, %11, %cst_8 {dimension_numbers = #tpu.dot_dimension_numbers<[1], [0], [0], [1], [0, 0, 1, 1], [], []>} : vector<8x128xbf16>, vector<128x128xbf16>, vector<8x128xf32> -> vector<8x128xf32>
    %c0_9 = arith.constant 0 : index
    %c0_10 = arith.constant 0 : index
    %14 = vector.load %arg5[%c0_9, %c0_10] : memref<1x128xf32, #tpu.memory_space<vmem>>, vector<1x128xf32>
    %15 = vector.broadcast %14 : vector<1x128xf32> to vector<8x128xf32>
    %16 = arith.addf %13, %15 : vector<8x128xf32>
    %17 = tpu.iota {dimensions = array<i32: 1>} : vector<8x128xi32>
    %c10_i32 = arith.constant 10 : i32
    %18 = vector.broadcast %c10_i32 : i32 to vector<8x128xi32>
    %19 = arith.cmpi slt, %17, %18 : vector<8x128xi32>
    %cst_11 = arith.constant -3.40282347E+38 : f32
    %20 = vector.broadcast %cst_11 : f32 to vector<8x128xf32>
    %21 = arith.select %19, %16, %20 : vector<8x128xi1>, vector<8x128xf32>
    %cst_12 = arith.constant dense<0xFF800000> : vector<8xf32>
    %22 = vector.multi_reduction <maximumf>, %21, %cst_12 [1] : vector<8x128xf32> to vector<8xf32>
    %23 = vector.shape_cast %22 : vector<8xf32> to vector<8x1xf32>
    %24 = vector.broadcast %23 : vector<8x1xf32> to vector<8x128xf32>
    %25 = arith.subf %21, %24 : vector<8x128xf32>
    %26 = math.exp %25 : vector<8x128xf32>
    %cst_13 = arith.constant dense<0.000000e+00> : vector<8xf32>
    %27 = vector.multi_reduction <add>, %26, %cst_13 [1] : vector<8x128xf32> to vector<8xf32>
    %28 = vector.shape_cast %27 : vector<8xf32> to vector<8x1xf32>
    %29 = vector.broadcast %23 : vector<8x1xf32> to vector<8x128xf32>
    %30 = arith.subf %21, %29 : vector<8x128xf32>
    %31 = math.log %28 : vector<8x1xf32>
    %32 = vector.broadcast %31 : vector<8x1xf32> to vector<8x128xf32>
    %33 = arith.subf %30, %32 : vector<8x128xf32>
    %c0_14 = arith.constant 0 : index
    %c0_15 = arith.constant 0 : index
    %34 = vector.load %arg6[%c0_14, %c0_15] : memref<8x128xf32, #tpu.memory_space<vmem>>, vector<8x128xf32>
    tpu.vector_store %arg6[%c0_14, %c0_15], %33 {strides = array<i32>} : memref<8x128xf32, #tpu.memory_space<vmem>>, vector<8x128xf32>,
    return
  }
  func.func @transform_0(%arg0: i32) -> (i32, i32) {
    %c0_i32 = arith.constant 0 : i32
    %c0_i32_0 = arith.constant 0 : i32
    return %arg0, %c0_i32 : i32, i32
  }
  func.func @transform_1(%arg0: i32) -> (i32, i32) {
    %c0_i32 = arith.constant 0 : i32
    %c0_i32_0 = arith.constant 0 : i32
    %c0_i32_1 = arith.constant 0 : i32
    return %c0_i32, %c0_i32_0 : i32, i32
  }
  func.func @transform_2(%arg0: i32) -> (i32, i32) {
    %c0_i32 = arith.constant 0 : i32
    %c0_i32_0 = arith.constant 0 : i32
    %c0_i32_1 = arith.constant 0 : i32
    return %c0_i32, %c0_i32_0 : i32, i32
  }
  func.func @transform_3(%arg0: i32) -> (i32, i32) {
    %c0_i32 = arith.constant 0 : i32
    %c0_i32_0 = arith.constant 0 : i32
    %c0_i32_1 = arith.constant 0 : i32
    return %c0_i32, %c0_i32_0 : i32, i32
  }
  func.func @transform_4(%arg0: i32) -> (i32, i32) {
    %c0_i32 = arith.constant 0 : i32
    %c0_i32_0 = arith.constant 0 : i32
    %c0_i32_1 = arith.constant 0 : i32
    return %c0_i32, %c0_i32_0 : i32, i32
  }
  func.func @transform_5(%arg0: i32) -> (i32, i32) {
    %c0_i32 = arith.constant 0 : i32
    %c0_i32_0 = arith.constant 0 : i32
    return %arg0, %c0_i32 : i32, i32
  }
}

</mosaic_0001>

<llo_original>
// kernel: tpu_custom_call.1
$region0: #{tpu_custom_call.1}
  #allocation0 [shape = 'u32[]', space=smem, size = 0x4, offset = 0x4, fixed_abs, tag = 'smem constant byte address 0x4 - core index']
  #allocation1 [shape = 'u32[72,128]{1,0:T(1,128)}', space=vmem, size = 0x9000, scoped, tag = 'internal scratch']
  %s0 = inlined_call_operand.hbm [shape: f32[2,256], index: 0, kind: input, shape index: {}]
  %s1 = inlined_call_operand.hbm [shape: f32[256,128], index: 1, kind: input, shape index: {}]
  %s2 = inlined_call_operand.vmem [shape: f32[1,128], index: 2, kind: input, shape index: {}]
  %s3 = inlined_call_operand.hbm [shape: f32[128,128], index: 3, kind: input, shape index: {}]
  %s4 = inlined_call_operand.vmem [shape: f32[1,128], index: 4, kind: input, shape index: {}]
  %s5 = inlined_call_operand.hbm [shape: f32[8,128], index: 5, kind: output, shape index: {}]
  %s6 = sld [smem:[#allocation0]]
  $region42: #{tpu_custom_call.1} parent=0
    _
  %s8 = ssub.s32 1, %s6
  %s9 = scalar_select 0, %s8, %s6
  $region1: #{tpu_custom_call.1} parent=0
    #allocation2 [shape = 'u8[8192]{0}', space=vmem, size = 0x2000, scoped, tag = 'input window, operand 0, single buffered']
    #allocation3 [shape = 's32[1]{0}', space=sflag, size = 0x4, scoped, tag = 'scoped memory for tpu_custom_call.1']
    #allocation4 [shape = 's32[1]{0}', space=sflag, size = 0x4, scoped, tag = 'scoped memory for tpu_custom_call.1']
    #allocation5 [shape = 'u8[131072]{0}', space=vmem, size = 0x20000, scoped, tag = 'input window, operand 1, single buffered']
    #allocation6 [shape = 's32[1]{0}', space=sflag, size = 0x4, scoped, tag = 'scoped memory for tpu_custom_call.1']
    #allocation7 [shape = 'u8[65536]{0}', space=vmem, size = 0x10000, scoped, tag = 'input window, operand 3, single buffered']
    #allocation8 [shape = 'u8[4096]{0}', space=vmem, size = 0x1000, scoped, tag = 'output window, operand 0, single buffered']
    %10 = vsyncpa [#allocation3], 0
    %11 = vsyncpa [#allocation6], 0
    %12 = vsyncpa [#allocation4], 0
    // Predicated region
    $region2: #{tpu_custom_call.1} parent=1 // pred_check
      _
    $region3: #{tpu_custom_call.1} parent=1 // pred_check_branch
      %14 = sbr.rel (0) target = $region5
    $region4: #{tpu_custom_call.1} parent=1 // pred_region
      %16 = vsyncadd [#allocation3], 192
      %s17 = sshll.u32 %s0, 4
      %s18 = int_to_ptr.hbm [resolvable:$true] %s17
      %s19 = sshll.u32 [#allocation2], 4
      %s20 = int_to_ptr.vmem [resolvable:$true] %s19
      %25 = dma.hbm_to_vmem [thread:$0]  %s18, 64, %s20, [#allocation3], 64, 64, 4
    $region5: #{tpu_custom_call.1} parent=1 // pred_fallthru
      _
    // Predicated region
    $region6: #{tpu_custom_call.1} parent=1 // pred_check
      _
    $region7: #{tpu_custom_call.1} parent=1 // pred_check_branch
      %27 = sbr.rel (0) target = $region9
    $region8: #{tpu_custom_call.1} parent=1 // pred_region
      %29 = vsyncadd [#allocation6], 0
      %s30 = sshll.u32 %s1, 4
      %s31 = int_to_ptr.hbm [resolvable:$true] %s30
      %s32 = sshll.u32 [#allocation5], 4
      %s33 = int_to_ptr.vmem [resolvable:$true] %s32
      %38 = dma.hbm_to_vmem [thread:$0]  %s31, 4096, %s33, [#allocation6], 128, 128, 8
    $region9: #{tpu_custom_call.1} parent=1 // pred_fallthru
      _
    // Predicated region
    $region10: #{tpu_custom_call.1} parent=1 // pred_check
      _
    $region11: #{tpu_custom_call.1} parent=1 // pred_check_branch
      %40 = sbr.rel (0) target = $region13
    $region12: #{tpu_custom_call.1} parent=1 // pred_region
      _
    $region13: #{tpu_custom_call.1} parent=1 // pred_fallthru
      _
    // Predicated region
    $region14: #{tpu_custom_call.1} parent=1 // pred_check
      _
    $region15: #{tpu_custom_call.1} parent=1 // pred_check_branch
      %42 = sbr.rel (0) target = $region17
    $region16: #{tpu_custom_call.1} parent=1 // pred_region
      %44 = vsyncadd [#allocation6], 0
      %s45 = sshll.u32 %s3, 4
      %s46 = int_to_ptr.hbm [resolvable:$true] %s45
      %s47 = sshll.u32 [#allocation7], 4
      %s48 = int_to_ptr.vmem [resolvable:$true] %s47
      %53 = dma.hbm_to_vmem [thread:$0]  %s46, 2048, %s48, [#allocation6], 128, 128, 8
    $region17: #{tpu_custom_call.1} parent=1 // pred_fallthru
      _
    // Predicated region
    $region18: #{tpu_custom_call.1} parent=1 // pred_check
      _
    $region19: #{tpu_custom_call.1} parent=1 // pred_check_branch
      %55 = sbr.rel (0) target = $region21
    $region20: #{tpu_custom_call.1} parent=1 // pred_region
      _
    $region21: #{tpu_custom_call.1} parent=1 // pred_fallthru
      _
    // Predicated region
    $region22: #{tpu_custom_call.1} parent=1 // pred_check
      _
    $region23: #{tpu_custom_call.1} parent=1 // pred_check_branch
      %57 = sbr.rel (0) target = $region25
    $region24: #{tpu_custom_call.1} parent=1 // pred_region
      %59 = dma.done [#allocation3], 256
    $region25: #{tpu_custom_call.1} parent=1 // pred_fallthru
      _
    // Predicated region
    $region26: #{tpu_custom_call.1} parent=1 // pred_check
      _
    $region27: #{tpu_custom_call.1} parent=1 // pred_check_branch
      %61 = sbr.rel (0) target = $region29
    $region28: #{tpu_custom_call.1} parent=1 // pred_region
      %63 = dma.done [#allocation6], 4096
    $region29: #{tpu_custom_call.1} parent=1 // pred_fallthru
      _
    // Predicated region
    $region30: #{tpu_custom_call.1} parent=1 // pred_check
      _
    $region31: #{tpu_custom_call.1} parent=1 // pred_check_branch
      %65 = sbr.rel (0) target = $region33
    $region32: #{tpu_custom_call.1} parent=1 // pred_region
      %67 = dma.done [#allocation6], 2048
    $region33: #{tpu_custom_call.1} parent=1 // pred_fallthru
      _
    %v68 = vld [vmem:[#allocation2] sm:$0xf]
    %v69 = vld [vmem:[#allocation2 + $0x4] sm:$0xf]
    %v70 = vld [vmem:[#allocation2 + $0x8] sm:$0xf]
    %v71 = vld [vmem:[#allocation2 + $0xc] sm:$0xf]
    %76 = vst [vmem:[#allocation1] ss:$4 sm:$0xff] %v68
    %s77 = scalar_lea.vmem [#allocation1], 1
    %78 = vst [vmem:[%s77] ss:$4 sm:$0xff] %v69
    %s79 = scalar_lea.vmem [#allocation1], 2
    %80 = vst [vmem:[%s79] ss:$4 sm:$0xff] %v70
    %s81 = scalar_lea.vmem [#allocation1], 3
    %82 = vst [vmem:[%s81] ss:$4 sm:$0xff] %v71
    %v83 = vld.sshfl [vmem:[#allocation1] sm:$0xff pattern:$0x73625140]
    %v84 = vld.sshfl [vmem:[#allocation1 + $0x8] sm:$0xff pattern:$0x73625140]
    %v87 = vpack.c.bf16 %v83, %v83
    %v88 = vpack.c.bf16 %v84, %v84
    %v89 = vld [vmem:[#allocation5] sm:$0xff]
    %v90 = vld [vmem:[#allocation5 + $0x8] sm:$0xff]
    %v91 = vld [vmem:[#allocation5 + $0x10] sm:$0xff]
    %v92 = vld [vmem:[#allocation5 + $0x18] sm:$0xff]
    %v93 = vld [vmem:[#allocation5 + $0x20] sm:$0xff]
    %v94 = vld [vmem:[#allocation5 + $0x28] sm:$0xff]
    %v95 = vld [vmem:[#allocation5 + $0x30] sm:$0xff]
    %v96 = vld [vmem:[#allocation5 + $0x38] sm:$0xff]
    %v97 = vld [vmem:[#allocation5 + $0x40] sm:$0xff]
    %v98 = vld [vmem:[#allocation5 + $0x48] sm:$0xff]
    %v99 = vld [vmem:[#allocation5 + $0x50] sm:$0xff]
    %v100 = vld [vmem:[#allocation5 + $0x58] sm:$0xff]
    %v101 = vld [vmem:[#allocation5 + $0x60] sm:$0xff]
    %v102 = vld [vmem:[#allocation5 + $0x68] sm:$0xff]
    %v103 = vld [vmem:[#allocation5 + $0x70] sm:$0xff]
    %v104 = vld [vmem:[#allocation5 + $0x78] sm:$0xff]
    %v105 = vld [vmem:[#allocation5 + $0x80] sm:$0xff]
    %v106 = vld [vmem:[#allocation5 + $0x88] sm:$0xff]
    %v107 = vld [vmem:[#allocation5 + $0x90] sm:$0xff]
    %v108 = vld [vmem:[#allocation5 + $0x98] sm:$0xff]
    %v109 = vld [vmem:[#allocation5 + $0xa0] sm:$0xff]
    %v110 = vld [vmem:[#allocation5 + $0xa8] sm:$0xff]
    %v111 = vld [vmem:[#allocation5 + $0xb0] sm:$0xff]
    %v112 = vld [vmem:[#allocation5 + $0xb8] sm:$0xff]
    %v113 = vld [vmem:[#allocation5 + $0xc0] sm:$0xff]
    %v114 = vld [vmem:[#allocation5 + $0xc8] sm:$0xff]
    %v115 = vld [vmem:[#allocation5 + $0xd0] sm:$0xff]
    %v116 = vld [vmem:[#allocation5 + $0xd8] sm:$0xff]
    %v117 = vld [vmem:[#allocation5 + $0xe0] sm:$0xff]
    %v118 = vld [vmem:[#allocation5 + $0xe8] sm:$0xff]
    %v119 = vld [vmem:[#allocation5 + $0xf0] sm:$0xff]
    %v120 = vld [vmem:[#allocation5 + $0xf8] sm:$0xff]
    %v121 = vpack.c.bf16 %v90, %v89
    %v122 = vpack.c.bf16 %v92, %v91
    %v123 = vpack.c.bf16 %v94, %v93
    %v124 = vpack.c.bf16 %v96, %v95
    %v125 = vpack.c.bf16 %v98, %v97
    %v126 = vpack.c.bf16 %v100, %v99
    %v127 = vpack.c.bf16 %v102, %v101
    %v128 = vpack.c.bf16 %v104, %v103
    %v129 = vpack.c.bf16 %v106, %v105
    %v130 = vpack.c.bf16 %v108, %v107
    %v131 = vpack.c.bf16 %v110, %v109
    %v132 = vpack.c.bf16 %v112, %v111
    %v133 = vpack.c.bf16 %v114, %v113
    %v134 = vpack.c.bf16 %v116, %v115
    %v135 = vpack.c.bf16 %v118, %v117
    %v136 = vpack.c.bf16 %v120, %v119
    %v137 = vld [vmem:[%s2] sm:$0x1]
    %v139 = vperm.slane %v137, 0
    %141 = vmatpush.bf16.msra.mxu0 %v128
    %142 = vmatpush.bf16.msra.mxu0 %v127
    %143 = vmatpush.bf16.msra.mxu0 %v126
    %144 = vmatpush.bf16.msra.mxu0 %v125
    %145 = vmatpush.bf16.msra.mxu0 %v124
    %146 = vmatpush.bf16.msra.mxu0 %v123
    %147 = vmatpush.bf16.msra.mxu0 %v122
    %148 = vmatpush.bf16.msra.mxu0 %v121
    %149 = vmatmul.bf16.gmra.mxu0 %v87
    %v150 = vpop.f32.mrf.mxu0
    %v151 = vadd.f32 %v139, %v150
    %v152 = vpop.f32.mrf.mxu0
    %153 = vdwg.mxu0
    %154 = vmatpush.bf16.msra.mxu0 %v136
    %155 = vmatpush.bf16.msra.mxu0 %v135
    %156 = vmatpush.bf16.msra.mxu0 %v134
    %157 = vmatpush.bf16.msra.mxu0 %v133
    %158 = vmatpush.bf16.msra.mxu0 %v132
    %159 = vmatpush.bf16.msra.mxu0 %v131
    %160 = vmatpush.bf16.msra.mxu0 %v130
    %161 = vmatpush.bf16.msra.mxu0 %v129
    %162 = vmatmul.bf16.gmra.mxu0 %v88
    %v163 = vpop.f32.mrf.mxu0
    %v164 = vadd.f32 %v151, %v163
    %v165 = vpop.f32.mrf.mxu0
    %166 = vdwg.mxu0
    %v167 = vmax.f32 %v164, 0.0
    %v168 = vld [vmem:[#allocation7] sm:$0xff]
    %v169 = vld [vmem:[#allocation7 + $0x8] sm:$0xff]
    %v170 = vld [vmem:[#allocation7 + $0x10] sm:$0xff]
    %v171 = vld [vmem:[#allocation7 + $0x18] sm:$0xff]
    %v172 = vld [vmem:[#allocation7 + $0x20] sm:$0xff]
    %v173 = vld [vmem:[#allocation7 + $0x28] sm:$0xff]
    %v174 = vld [vmem:[#allocation7 + $0x30] sm:$0xff]
    %v175 = vld [vmem:[#allocation7 + $0x38] sm:$0xff]
    %v176 = vld [vmem:[#allocation7 + $0x40] sm:$0xff]
    %v177 = vld [vmem:[#allocation7 + $0x48] sm:$0xff]
    %v178 = vld [vmem:[#allocation7 + $0x50] sm:$0xff]
    %v179 = vld [vmem:[#allocation7 + $0x58] sm:$0xff]
    %v180 = vld [vmem:[#allocation7 + $0x60] sm:$0xff]
    %v181 = vld [vmem:[#allocation7 + $0x68] sm:$0xff]
    %v182 = vld [vmem:[#allocation7 + $0x70] sm:$0xff]
    %v183 = vld [vmem:[#allocation7 + $0x78] sm:$0xff]
    %v184 = vpack.c.bf16 %v169, %v168
    %v185 = vpack.c.bf16 %v171, %v170
    %v186 = vpack.c.bf16 %v173, %v172
    %v187 = vpack.c.bf16 %v175, %v174
    %v188 = vpack.c.bf16 %v177, %v176
    %v189 = vpack.c.bf16 %v179, %v178
    %v190 = vpack.c.bf16 %v181, %v180
    %v191 = vpack.c.bf16 %v183, %v182
    %v192 = vpack.c.bf16 %v167, %v167
    %v193 = vld [vmem:[%s4] sm:$0x1]
    %v195 = vperm.slane %v193, 0
    %197 = vmatpush.bf16.msra.mxu0 %v191
    %198 = vmatpush.bf16.msra.mxu0 %v190
    %199 = vmatpush.bf16.msra.mxu0 %v189
    %200 = vmatpush.bf16.msra.mxu0 %v188
    %201 = vmatpush.bf16.msra.mxu0 %v187
    %202 = vmatpush.bf16.msra.mxu0 %v186
    %203 = vmatpush.bf16.msra.mxu0 %v185
    %204 = vmatpush.bf16.msra.mxu0 %v184
    %205 = vmatmul.bf16.gmra.mxu0 %v192
    %v206 = vpop.f32.mrf.mxu0
    %v207 = vadd.f32 %v195, %v206
    %v208 = vpop.f32.mrf.mxu0
    %209 = vdwg.mxu0
    %v210 = vlaneseq
    %v211 = vand.u32 %v210, 127
    %vm212 = vcmp.lt.s32.totalorder %v211, 10
    %v213 = vsel %vm212, %v207, -3.4028235e+38
    %214 = vmax.xlane.f32.xlu0 %v213
    %v215 = vpop.xlane.xlu0 %214
    %v216 = vsub.f32 %v213, %v215
    %v217 = vmul.f32 %v216, 1.442695
    %v218 = vpow.pop %v217
    %219 = vadd.xlane.f32.xlu0 %v218
    %v220 = vpop.xlane.xlu0 %219
    %v221 = vlog2.pop %v220
    %v222 = vmul.f32 %v221, 0.6931472
    %v223 = vsub.f32 %v216, %v222
    %224 = vst [vmem:[#allocation8] sm:$0xff] %v223
    // Predicated region
    $region34: #{tpu_custom_call.1} parent=1 // pred_check
      _
    $region35: #{tpu_custom_call.1} parent=1 // pred_check_branch
      %226 = sbr.rel (0) target = $region37
    $region36: #{tpu_custom_call.1} parent=1 // pred_region
      %228 = vsyncadd [#allocation4], 0
      %s230 = sshll.u32 [#allocation8], 4
      %s231 = int_to_ptr.vmem [resolvable:$true] %s230
      %s232 = sshll.u32 %s5, 4
      %s233 = int_to_ptr.hbm [resolvable:$true] %s232
      %235 = dma.vmem_to_hbm [thread:$0]  %s231, 128, %s233, [#allocation4]
    $region37: #{tpu_custom_call.1} parent=1 // pred_fallthru
      _
    // Predicated region
    $region38: #{tpu_custom_call.1} parent=1 // pred_check
      _
    $region39: #{tpu_custom_call.1} parent=1 // pred_check_branch
      %237 = sbr.rel (0) target = $region41
    $region40: #{tpu_custom_call.1} parent=1 // pred_region
      %239 = dma.done [#allocation4], 128
    $region41: #{tpu_custom_call.1} parent=1 // pred_fallthru
      _
    %240 = vsyncpa [#allocation3], 1
    %241 = vsyncpa [#allocation6], 1
    %242 = vsyncpa [#allocation4], 1

</llo_original>
